<compile_context>
chip_gen: v7x
topology: tpu7x:2x2x1
jax: 0.10.0
libtpu: 0.0.40
codegen_flags: <defaults>
</compile_context>

<pallas_src>
import functools

import jax
import jax.numpy as jnp
from jax.experimental import pallas as pl
from jax.experimental.pallas import tpu as pltpu

_LANE = 128
# Per-grid-step byte budget across all blocks (single-buffered).  Pallas
# double-buffers each stream, so resident footprint ~= 2x this.
_BLOCK_BUDGET_BYTES = 12 * 1024 * 1024
_VMEM_LIMIT_BYTES = 48 * 1024 * 1024
# Below this many elements a pallas_call launch costs more than it saves.
_MIN_PALLAS_ELEMS = 64 * 1024


# ---------------------------------------------------------------------------
# Loss math (shared by kernels, tail handling and the tiny-input bypass)
# ---------------------------------------------------------------------------
def _elemwise_loss(x, t, type_loss):
    if type_loss == "L1":
        return jnp.abs(x - t)
    elif type_loss == "CE":
        # Matches torch.log(torch.max(inputs, 1e-20 * ones_like(inputs))).
        return -1.0 * (jnp.log(jnp.maximum(x, 1e-20)) * t)
    else:  # "L2" (default)
        d = x - t
        return d * d


# ---------------------------------------------------------------------------
# Kernels
# ---------------------------------------------------------------------------
def _loss_kernel_noreduce(x_ref, t_ref, o_ref, *, type_loss):
    # Cast to f32 on the VPU (free relative to DMA) rather than in the wrapper.
    x = x_ref[...].astype(jnp.float32)
    t = t_ref[...].astype(jnp.float32)
    o_ref[...] = _elemwise_loss(x, t, type_loss).astype(o_ref.dtype)


def _loss_kernel_reduce(x_ref, t_ref, o_ref, *, type_loss, reduction, d):
    x = x_ref[...].astype(jnp.float32)
    t = t_ref[...].astype(jnp.float32)
    red = jnp.sum(_elemwise_loss(x, t, type_loss), axis=-1)  # (bn,)
    if reduction == "mean":
        red = red * (1.0 / d)
    o_ref[...] = red.astype(o_ref.dtype)


def _loss_kernel_reduce_ktiled(x_ref, t_ref, o_ref, acc_ref, *, type_loss,
                               reduction, d, tk, need_mask):
    k = pl.program_id(1)

    @pl.when(k == 0)
    def _():
        acc_ref[...] = jnp.zeros_like(acc_ref)

    x = x_ref[...].astype(jnp.float32)
    t = t_ref[...].astype(jnp.float32)
    r = _elemwise_loss(x, t, type_loss)
    if need_mask:
        # Last K block overhangs D: zero the out-of-range columns so garbage
        # reads never pollute the row sums.
        col = jax.lax.broadcasted_iota(jnp.int32, r.shape, 1) + k * tk
        r = jnp.where(col < d, r, 0.0)
    acc_ref[...] += jnp.sum(r, axis=-1)

    @pl.when(k == pl.num_programs(1) - 1)
    def _():
        red = acc_ref[...]
        if reduction == "mean":
            red = red * (1.0 / d)
        o_ref[...] = red.astype(o_ref.dtype)


# ---------------------------------------------------------------------------
# Helpers
# ---------------------------------------------------------------------------
def _compiler_params(dim_semantics):
    return pltpu.CompilerParams(
        dimension_semantics=dim_semantics,
        vmem_limit_bytes=_VMEM_LIMIT_BYTES,
    )


def _sublane_multiple(*dtypes):
    # Sub-32-bit dtypes pack along sublanes: f32 -> 8 rows, bf16 -> 16,
    # int8/fp8 -> 32.  Use the strictest requirement among the streams.
    return 8 * max(max(1, 4 // max(1, jnp.dtype(dt).itemsize)) for dt in dtypes)


def _pick_cols(total):
    """Largest multiple-of-128 divisor of `total` that is <= 8192, preferring
    one that leaves >= 16 rows (so the grid can have >= 2 steps)."""
    best = None
    for c in range(8192, _LANE - 1, -_LANE):
        if total % c == 0:
            if best is None:
                best = c
            if total // c >= 16:
                return c
    return best


# ---------------------------------------------------------------------------
# Wrappers
# ---------------------------------------------------------------------------
def _elemwise_pallas_2d(x2, t2, type_loss, out_dtype):
    rows, cols = x2.shape
    sub = _sublane_multiple(x2.dtype, t2.dtype, out_dtype)
    per_row = cols * (x2.dtype.itemsize + t2.dtype.itemsize
                      + jnp.dtype(out_dtype).itemsize)
    block_rows = max(sub, (_BLOCK_BUDGET_BYTES // per_row) // sub * sub)
    block_rows = min(block_rows, rows)  # full extent when rows is small
    if rows >= 2 * sub:
        # Cap so the grid has >= 2 steps (v7x: both TensorCores get work).
        block_rows = min(block_rows, pl.cdiv(pl.cdiv(rows, 2), sub) * sub)

    grid = (pl.cdiv(rows, block_rows),)  # ragged last block masked by Pallas
    kernel = functools.partial(_loss_kernel_noreduce, type_loss=type_loss)
    return pl.pallas_call(
        kernel,
        out_shape=jax.ShapeDtypeStruct((rows, cols), out_dtype),
        grid=grid,
        in_specs=[
            pl.BlockSpec((block_rows, cols), lambda i: (i, 0)),
            pl.BlockSpec((block_rows, cols), lambda i: (i, 0)),
        ],
        out_specs=pl.BlockSpec((block_rows, cols), lambda i: (i, 0)),
        compiler_params=_compiler_params(("parallel",)),
    )(x2, t2)


def _seglosses_elemwise(inputs, targets, type_loss, out_dtype):
    """Pure elementwise path: flatten into a lane-dense (rows, cols) slab."""
    orig_shape = inputs.shape
    total = inputs.size
    x = inputs.reshape(-1)
    t = targets.reshape(-1)

    cols = _pick_cols(total)
    if cols is not None:
        rows = total // cols
        out = _elemwise_pallas_2d(x.reshape(rows, cols), t.reshape(rows, cols),
                                  type_loss, out_dtype)
        return out.reshape(orig_shape)

    # No multiple-of-128 divisor of `total`: stream the 128-aligned bulk
    # through the kernel and finish the <128-element tail with plain jnp
    # (avoids the pad-both-inputs + slice-output fallback).
    bulk = (total // _LANE) * _LANE
    cols = _pick_cols(bulk)  # always succeeds: 128 divides bulk
    rows = bulk // cols
    out_bulk = _elemwise_pallas_2d(x[:bulk].reshape(rows, cols),
                                   t[:bulk].reshape(rows, cols),
                                   type_loss, out_dtype).reshape(-1)
    tail = _elemwise_loss(x[bulk:].astype(jnp.float32),
                          t[bulk:].astype(jnp.float32),
                          type_loss).astype(out_dtype)
    return jnp.concatenate([out_bulk, tail]).reshape(orig_shape)


def _seglosses_reduce(inputs, targets, type_loss, reduction, out_dtype):
    """Last-axis reduction path: (rows, D) inputs, lane-dense 1-D output."""
    orig_shape = inputs.shape
    d = orig_shape[-1]
    n_rows = inputs.size // d
    x2 = inputs.reshape(n_rows, d)
    t2 = targets.reshape(n_rows, d)

    in_bytes = x2.dtype.itemsize + t2.dtype.itemsize
    d_pad = pl.cdiv(d, _LANE) * _LANE  # VMEM tiles pad the lane dim to 128

    # Row block: multiple of 128 (lane-dense 1-D output) or the full extent.
    if n_rows < _LANE:
        bn = n_rows
    else:
        bn = (_BLOCK_BUDGET_BYTES // (d_pad * in_bytes)) // _LANE * _LANE
        bn = max(_LANE, bn)
        bn = min(bn, (n_rows // _LANE) * _LANE)
        if n_rows >= 2 * _LANE:
            # >= 2 row blocks so the parallel axis can split across v7x's TCs.
            bn = min(bn, pl.cdiv(pl.cdiv(n_rows, 2), _LANE) * _LANE)

    num_row_blocks = pl.cdiv(n_rows, bn)

    if bn * d_pad * in_bytes <= _BLOCK_BUDGET_BYTES:
        # Full-D block per grid step: single in-kernel reduction.
        kernel = functools.partial(_loss_kernel_reduce, type_loss=type_loss,
                                   reduction=reduction, d=d)
        out = pl.pallas_call(
            kernel,
            out_shape=jax.ShapeDtypeStruct((n_rows,), out_dtype),
            grid=(num_row_blocks,),
            in_specs=[
                pl.BlockSpec((bn, d), lambda i: (i, 0)),
                pl.BlockSpec((bn, d), lambda i: (i, 0)),
            ],
            out_specs=pl.BlockSpec((bn,), lambda i: (i,)),
            compiler_params=_compiler_params(("parallel",)),
        )(x2, t2)
    else:
        # Very wide D: tile the reduction axis too (keeps blocks inside the
        # VMEM budget instead of forcing a huge full-D block) and accumulate
        # partial row sums in an f32 VMEM scratch.
        tk = (_BLOCK_BUDGET_BYTES // (bn * in_bytes)) // _LANE * _LANE
        tk = max(_LANE, min(tk, d_pad))
        nk = pl.cdiv(d, tk)
        kernel = functools.partial(_loss_kernel_reduce_ktiled,
                                   type_loss=type_loss, reduction=reduction,
                                   d=d, tk=tk, need_mask=(d % tk != 0))
        out = pl.pallas_call(
            kernel,
            out_shape=jax.ShapeDtypeStruct((n_rows,), out_dtype),
            grid=(num_row_blocks, nk),
            in_specs=[
                pl.BlockSpec((bn, tk), lambda i, k: (i, k)),
                pl.BlockSpec((bn, tk), lambda i, k: (i, k)),
            ],
            out_specs=pl.BlockSpec((bn,), lambda i, k: (i,)),
            scratch_shapes=[pltpu.VMEM((bn,), jnp.float32)],
            compiler_params=_compiler_params(("parallel", "arbitrary")),
        )(x2, t2)
    return out.reshape(orig_shape[:-1])


def _seglosses_small(inputs, targets, type_loss, reduction, out_dtype):
    """Tiny-input bypass: plain jnp is faster than a pallas_call launch."""
    ret = _elemwise_loss(inputs.astype(jnp.float32),
                         targets.astype(jnp.float32), type_loss)
    if reduction is not None:
        ret = jnp.mean(ret, -1) if reduction == "mean" else jnp.sum(ret, -1)
    return ret.astype(out_dtype)


def seglosses_pallas(inputs, targets, type_loss="L2", reduction=None):
    """Pallas TPU implementation of the PyTorch `seglosses` forward pass."""
    assert inputs.shape == targets.shape
    out_dtype = jnp.promote_types(inputs.dtype, targets.dtype)
    if inputs.size < _MIN_PALLAS_ELEMS:
        return _seglosses_small(inputs, targets, type_loss, reduction, out_dtype)
    if reduction is None:
        return _seglosses_elemwise(inputs, targets, type_loss, out_dtype)
    return _seglosses_reduce(inputs, targets, type_loss, reduction, out_dtype)


# ---------------------------------------------------------------------------
# Reference (pure JAX) for verification
# ---------------------------------------------------------------------------
def seglosses_ref(inputs, targets, type_loss="L2", reduction=None):
    if type_loss == "L1":
        ret = jnp.abs(inputs - targets)
    elif type_loss == "CE":
        ret = -1.0 * (jnp.log(jnp.maximum(inputs, 1e-20)) * targets)
    else:
        ret = (inputs - targets) ** 2
    if reduction is not None:
        ret = jnp.mean(ret, -1) if reduction == "mean" else jnp.sum(ret, -1)
    return ret


if __name__ == "__main__":
    key = jax.random.PRNGKey(0)

    def make_inputs(shape, k):
        k1, k2 = jax.random.split(k)
        # Positive inputs keep the 'CE' log path well-defined.
        x = jax.random.uniform(k1, shape, jnp.float32, minval=0.01, maxval=1.0)
        t = jax.random.uniform(k2, shape, jnp.float32, minval=0.0, maxval=1.0)
        return x, t

    # (shape, [(type_loss, reduction), ...]) — covers every code path:
    #   tiny bypass, lane-dense elementwise, bulk+tail ragged total,
    #   simple reduce, and the K-tiled wide-D reduce.
    test_cases = [
        ((2, 4, 16, 16), [("L2", None), ("L1", None), ("CE", None),
                          ("L2", "mean"), ("L1", "mean"), ("CE", "mean"),
                          ("L2", "sum"), ("L1", "sum"), ("CE", "sum")]),
        ((4, 8, 32, 128), [("L2", None), ("L1", None), ("CE", None),
                           ("L2", "mean"), ("L1", "sum"), ("CE", "mean")]),
        ((3, 5, 67, 67), [("L2", None), ("CE", None), ("L1", "sum")]),
        ((256, 16384), [("L2", "sum"), ("CE", "mean")]),
    ]

    ok = True
    keys = jax.random.split(key, len(test_cases))
    for (shape, combos), kk in zip(test_cases, keys):
        inputs, targets = make_inputs(shape, kk)
        for type_loss, reduction in combos:
            out = jax.block_until_ready(
                seglosses_pallas(inputs, targets, type_loss, reduction))
            ref = seglosses_ref(inputs, targets, type_loss, reduction)
            if out.shape != ref.shape or not jnp.allclose(
                    out, ref, atol=1e-4, rtol=1e-3):
                ok = False
                print(f"MISMATCH shape={shape} type_loss={type_loss} "
                      f"reduction={reduction}")

    if ok:
        print("KERNEL_OK")
</pallas_src>

<mosaic_0001>
module attributes {stable_mosaic.version = 11 : i64} {
  func.func @_loss_kernel_noreduce(%arg0: i32, %arg1: memref<8x8192xf32, #tpu.memory_space<vmem>>, %arg2: memref<8x8192xf32, #tpu.memory_space<vmem>>, %arg3: memref<8x8192xf32, #tpu.memory_space<vmem>>) attributes {dimension_semantics = [#tpu.dimension_semantics<parallel>], iteration_bounds = array<i64: 2>, scalar_prefetch = 0 : i64, scratch_operands = 0 : i64, tpu.core_type = #tpu.core_type<tc>, window_params = [{transform_indices = @transform_0, window_bounds = array<i64: 8, 8192>}, {transform_indices = @transform_1, window_bounds = array<i64: 8, 8192>}, {transform_indices = @transform_2, window_bounds = array<i64: 8, 8192>}]} {
    %c0 = arith.constant 0 : index
    %c0_0 = arith.constant 0 : index
    %0 = vector.load %arg1[%c0, %c0_0] : memref<8x8192xf32, #tpu.memory_space<vmem>>, vector<8x8192xf32>
    %c0_1 = arith.constant 0 : index
    %c0_2 = arith.constant 0 : index
    %1 = vector.load %arg2[%c0_1, %c0_2] : memref<8x8192xf32, #tpu.memory_space<vmem>>, vector<8x8192xf32>
    %2 = arith.subf %0, %1 : vector<8x8192xf32>
    %3 = arith.mulf %2, %2 : vector<8x8192xf32>
    %c0_3 = arith.constant 0 : index
    %c0_4 = arith.constant 0 : index
    %4 = vector.load %arg3[%c0_3, %c0_4] : memref<8x8192xf32, #tpu.memory_space<vmem>>, vector<8x8192xf32>
    tpu.vector_store %arg3[%c0_3, %c0_4], %3 {strides = array<i32>} : memref<8x8192xf32, #tpu.memory_space<vmem>>, vector<8x8192xf32>,
    return
  }
  func.func @transform_0(%arg0: i32) -> (i32, i32) {
    %c0_i32 = arith.constant 0 : i32
    %c0_i32_0 = arith.constant 0 : i32
    return %arg0, %c0_i32 : i32, i32
  }
  func.func @transform_1(%arg0: i32) -> (i32, i32) {
    %c0_i32 = arith.constant 0 : i32
    %c0_i32_0 = arith.constant 0 : i32
    return %arg0, %c0_i32 : i32, i32
  }
  func.func @transform_2(%arg0: i32) -> (i32, i32) {
    %c0_i32 = arith.constant 0 : i32
    %c0_i32_0 = arith.constant 0 : i32
    return %arg0, %c0_i32 : i32, i32
  }
}

</mosaic_0001>

<llo_original>
// kernel: tpu_custom_call.1
$region0: #{tpu_custom_call.1}
  #allocation0 [shape = 'u32[]', space=smem, size = 0x4, offset = 0x4, fixed_abs, tag = 'smem constant byte address 0x4 - core index']
  #allocation1 [shape = 'u32[144,128]{1,0:T(1,128)}', space=vmem, size = 0x12000, scoped, tag = 'internal scratch']
  %s0 = inlined_call_operand.hbm [shape: f32[16,8192], index: 0, kind: input, shape index: {}]
  %s1 = inlined_call_operand.hbm [shape: f32[16,8192], index: 1, kind: input, shape index: {}]
  %s2 = inlined_call_operand.hbm [shape: f32[16,8192], index: 2, kind: output, shape index: {}]
  %s3 = sld [smem:[#allocation0]]
  $region49: #{tpu_custom_call.1} parent=0
    _
  %s5 = ssub.s32 1, %s3
  %s6 = scalar_select 0, %s5, %s3
  $region1: #{tpu_custom_call.1} parent=0
    #allocation2 [shape = 'u8[524288]{0}', space=vmem, size = 0x80000, scoped, tag = 'input window, operand 0']
    #allocation3 [shape = 's32[2]{0}', space=sflag, size = 0x8, scoped, tag = 'scoped memory for tpu_custom_call.1']
    #allocation4 [shape = 's32[2]{0}', space=sflag, size = 0x8, scoped, tag = 'scoped memory for tpu_custom_call.1']
    #allocation5 [shape = 'u8[524288]{0}', space=vmem, size = 0x80000, scoped, tag = 'input window, operand 1']
    #allocation6 [shape = 's32[2]{0}', space=sflag, size = 0x8, scoped, tag = 'scoped memory for tpu_custom_call.1']
    #allocation7 [shape = 'u8[524288]{0}', space=vmem, size = 0x80000, scoped, tag = 'output window, operand 0']
    %7 = vsyncpa [#allocation3], 0
    %s8 = scalar_lea.sflag [#allocation3], 1
    %9 = vsyncpa %s8, 0
    %10 = vsyncpa [#allocation6], 0
    %s11 = scalar_lea.sflag [#allocation6], 1
    %12 = vsyncpa %s11, 0
    %13 = vsyncpa [#allocation4], 0
    %s14 = scalar_lea.sflag [#allocation4], 1
    %15 = vsyncpa %s14, 0
    loop: start=0, step=1, limit=4
    $region2: #{tpu_custom_call.1} parent=1 // loop_pre_header
      _
    $region3: #{tpu_custom_call.1} parent=1 // loop_header
      %s17 = sphi 0, %s21
      %p18 = scmp.ge.s32.totalorder %s17, 4
      %s27 = sphi 0, %s29
      %s30 = sphi 0, %s27
      %s31 = sphi 0, %s30
      %s47 = sphi 0, %s31
      %s53 = sphi 0, %s55
      %s56 = sphi 0, %s53
      %s57 = sphi 0, %s56
      %s73 = sphi 0, %s57
      %s79 = sphi 0, %s81
      %s82 = sphi 0, %s79
      %s83 = sphi 0, %s82
      %s99 = sphi 0, %s83
    $region4: #{tpu_custom_call.1} parent=1 // loop_header_branch
      %20 = sbr.rel (%p18) target = $region8
    $region5: #{tpu_custom_call.1} parent=1 // loop_body
      %s22 = ssub.s32 %s17, 1
      %s23 = ssub.s32 %s17, 2
      %s24 = sadd.s32 %s17, 1
      %s25 = ssub.s32 %s17, %s24
      %p26 = scmp.eq.s32.totalorder %s25, 0
      %s28 = sadd.s32 %s27, 1
      %s29 = scalar_select %p26, %s27, %s28
      %p32 = pneg %p26
      %p33 = scmp.eq.s32.totalorder %s17, 1
      %p34 = por %p32, %p33
      %p35 = scmp.ne.s32.totalorder %s27, %s30
      %p36 = scmp.eq.s32.totalorder %s17, 0
      %p37 = por %p35, %p36
      %p38 = scmp.ne.s32.totalorder %s27, %s30
      %p39 = scmp.eq.s32.totalorder %s22, 1
      %p40 = por %p38, %p39
      %p41 = scmp.ne.s32.totalorder %s30, %s31
      %p42 = scmp.eq.s32.totalorder %s22, 0
      %p43 = por %p41, %p42
      %p44 = scmp.ne.s32.totalorder %s30, %s31
      %p45 = scmp.eq.s32.totalorder %s23, 1
      %p46 = por %p44, %p45
      %p48 = scmp.ne.s32.totalorder %s31, %s47
      %p49 = scmp.eq.s32.totalorder %s23, 0
      %p50 = por %p48, %p49
      %s51 = ssub.s32 %s17, %s24
      %p52 = scmp.eq.s32.totalorder %s51, 0
      %s54 = sadd.s32 %s53, 1
      %s55 = scalar_select %p52, %s53, %s54
      %p58 = pneg %p52
      %p59 = scmp.eq.s32.totalorder %s17, 1
      %p60 = por %p58, %p59
      %p61 = scmp.ne.s32.totalorder %s53, %s56
      %p62 = scmp.eq.s32.totalorder %s17, 0
      %p63 = por %p61, %p62
      %p64 = scmp.ne.s32.totalorder %s53, %s56
      %p65 = scmp.eq.s32.totalorder %s22, 1
      %p66 = por %p64, %p65
      %p67 = scmp.ne.s32.totalorder %s56, %s57
      %p68 = scmp.eq.s32.totalorder %s22, 0
      %p69 = por %p67, %p68
      %p70 = scmp.ne.s32.totalorder %s56, %s57
      %p71 = scmp.eq.s32.totalorder %s23, 1
      %p72 = por %p70, %p71
      %p74 = scmp.ne.s32.totalorder %s57, %s73
      %p75 = scmp.eq.s32.totalorder %s23, 0
      %p76 = por %p74, %p75
      %s77 = ssub.s32 %s17, %s24
      %p78 = scmp.eq.s32.totalorder %s77, 0
      %s80 = sadd.s32 %s79, 1
      %s81 = scalar_select %p78, %s79, %s80
      %p84 = pneg %p78
      %p85 = scmp.eq.s32.totalorder %s17, 1
      %p86 = por %p84, %p85
      %p87 = scmp.ne.s32.totalorder %s79, %s82
      %p88 = scmp.eq.s32.totalorder %s17, 0
      %p89 = por %p87, %p88
      %p90 = scmp.ne.s32.totalorder %s79, %s82
      %p91 = scmp.eq.s32.totalorder %s22, 1
      %p92 = por %p90, %p91
      %p93 = scmp.ne.s32.totalorder %s82, %s83
      %p94 = scmp.eq.s32.totalorder %s22, 0
      %p95 = por %p93, %p94
      %p96 = scmp.ne.s32.totalorder %s82, %s83
      %p97 = scmp.eq.s32.totalorder %s23, 1
      %p98 = por %p96, %p97
      %p100 = scmp.ne.s32.totalorder %s83, %s99
      %p101 = scmp.eq.s32.totalorder %s23, 0
      %p102 = por %p100, %p101
      %p103 = scmp.le.s32.totalorder 1, %s17
      %p104 = scmp.lt.s32.totalorder %s17, 3
      %p105 = pnand %p103, %p104
      %p106 = pneg %p105
      // Predicated region
      $region9: #{tpu_custom_call.1} parent=5 // pred_check
        _
      $region10: #{tpu_custom_call.1} parent=5 // pred_check_branch
        %108 = sbr.rel (%p105) target = $region12
      $region11: #{tpu_custom_call.1} parent=5 // pred_region
        %s109 = ssub.s32 %s17, 1
      $region12: #{tpu_custom_call.1} parent=5 // pred_fallthru
        _
      %p110 = scmp.lt.s32.totalorder %s17, 2
      // Predicated region
      $region13: #{tpu_custom_call.1} parent=5 // pred_check
        %p111 = pneg %p110
      $region14: #{tpu_custom_call.1} parent=5 // pred_check_branch
        %113 = sbr.rel (%p111) target = $region16
      $region15: #{tpu_custom_call.1} parent=5 // pred_region
        // Predicated region
        $region17: #{tpu_custom_call.1} parent=15 // pred_check
          %p114 = pneg %p37
        $region18: #{tpu_custom_call.1} parent=15 // pred_check_branch
          %116 = sbr.rel (%p114) target = $region20
        $region19: #{tpu_custom_call.1} parent=15 // pred_region
          %s117 = sand.u32 %s27, 1
          %s118 = scalar_lea.sflag [#allocation3], %s117
          %s119 = sand.u32 %s27, 1
          %s120 = smul.addr %s119, 512
          %s121 = scalar_lea.vmem [#allocation2], %s120
          %s123 = ssub.s32 8192, 8192
          %124 = vsyncadd %s118, %s123
          %s125 = smul.addr %s17, 64
          %s126 = smul.addr %s125, 128
          %s127 = scalar_lea.hbm %s0, %s126
          %s129 = sshll.u32 %s121, 4
          %s130 = int_to_ptr.vmem [resolvable:$true] %s129
          %132 = dma.hbm_to_vmem [thread:$0]  %s127, 8192, %s130, %s118
        $region20: #{tpu_custom_call.1} parent=15 // pred_fallthru
          _
        // Predicated region
        $region21: #{tpu_custom_call.1} parent=15 // pred_check
          %p133 = pneg %p63
        $region22: #{tpu_custom_call.1} parent=15 // pred_check_branch
          %135 = sbr.rel (%p133) target = $region24
        $region23: #{tpu_custom_call.1} parent=15 // pred_region
          %s136 = sand.u32 %s53, 1
          %s137 = scalar_lea.sflag [#allocation6], %s136
          %s138 = sand.u32 %s53, 1
          %s139 = smul.addr %s138, 512
          %s140 = scalar_lea.vmem [#allocation5], %s139
          %s142 = ssub.s32 8192, 8192
          %143 = vsyncadd %s137, %s142
          %s144 = smul.addr %s17, 64
          %s145 = smul.addr %s144, 128
          %s146 = scalar_lea.hbm %s1, %s145
          %s148 = sshll.u32 %s140, 4
          %s149 = int_to_ptr.vmem [resolvable:$true] %s148
          %151 = dma.hbm_to_vmem [thread:$0]  %s146, 8192, %s149, %s137
        $region24: #{tpu_custom_call.1} parent=15 // pred_fallthru
          _
      $region16: #{tpu_custom_call.1} parent=5 // pred_fallthru
        _
      %p152 = scmp.le.s32.totalorder 1, %s17
      %p153 = scmp.lt.s32.totalorder %s17, 3
      %p154 = pnand %p152, %p153
      %p155 = pneg %p154
      // Predicated region
      $region25: #{tpu_custom_call.1} parent=5 // pred_check
        _
      $region26: #{tpu_custom_call.1} parent=5 // pred_check_branch
        %157 = sbr.rel (%p154) target = $region28
      $region27: #{tpu_custom_call.1} parent=5 // pred_region
        %s158 = ssub.s32 %s17, 1
        %s159 = sand.u32 %s30, 1
        %s160 = scalar_lea.sflag [#allocation3], %s159
        %s161 = sand.u32 %s30, 1
        %s162 = smul.addr %s161, 512
        %s163 = scalar_lea.vmem [#allocation2], %s162
        // Predicated region
        $region29: #{tpu_custom_call.1} parent=27 // pred_check
          %p164 = pneg %p43
        $region30: #{tpu_custom_call.1} parent=27 // pred_check_branch
          %166 = sbr.rel (%p164) target = $region32
        $region31: #{tpu_custom_call.1} parent=27 // pred_region
          %167 = dma.done %s160, 8192
        $region32: #{tpu_custom_call.1} parent=27 // pred_fallthru
          _
        %s168 = sand.u32 %s56, 1
        %s169 = scalar_lea.sflag [#allocation6], %s168
        %s170 = sand.u32 %s56, 1
        %s171 = smul.addr %s170, 512
        %s172 = scalar_lea.vmem [#allocation5], %s171
        // Predicated region
        $region33: #{tpu_custom_call.1} parent=27 // pred_check
          %p173 = pneg %p69
        $region34: #{tpu_custom_call.1} parent=27 // pred_check_branch
          %175 = sbr.rel (%p173) target = $region36
        $region35: #{tpu_custom_call.1} parent=27 // pred_region
          %176 = dma.done %s169, 8192
        $region36: #{tpu_custom_call.1} parent=27 // pred_fallthru
          _
        %s177 = sand.u32 %s30, 1
        %s178 = scalar_lea.sflag [#allocation3], %s177
        %s179 = sand.u32 %s30, 1
        %s180 = smul.addr %s179, 512
        %s181 = scalar_lea.vmem [#allocation2], %s180
        %p182 = pneg %p43
        %p183 = pneg %p40
        %s184 = sand.u32 %s56, 1
        %s185 = scalar_lea.sflag [#allocation6], %s184
        %s186 = sand.u32 %s56, 1
        %s187 = smul.addr %s186, 512
        %s188 = scalar_lea.vmem [#allocation5], %s187
        %p189 = pneg %p69
        %p190 = pneg %p66
        %p191 = pneg %p95
        %p192 = pneg %p92
        %s193 = sand.u32 %s82, 1
        %s194 = scalar_lea.sflag [#allocation4], %s193
        %s195 = sand.u32 %s82, 1
        %s196 = smul.addr %s195, 512
        %s197 = scalar_lea.vmem [#allocation7], %s196
        %v198 = vld [vmem:[%s163] sm:$0xff]
        %v199 = vld [vmem:[%s163 + $0x8] sm:$0xff]
        %v200 = vld [vmem:[%s163 + $0x10] sm:$0xff]
        %v201 = vld [vmem:[%s163 + $0x18] sm:$0xff]
        %v202 = vld [vmem:[%s163 + $0x20] sm:$0xff]
        %v203 = vld [vmem:[%s163 + $0x28] sm:$0xff]
        %v204 = vld [vmem:[%s163 + $0x30] sm:$0xff]
        %v205 = vld [vmem:[%s163 + $0x38] sm:$0xff]
        %v206 = vld [vmem:[%s163 + $0x40] sm:$0xff]
        %v207 = vld [vmem:[%s163 + $0x48] sm:$0xff]
        %v208 = vld [vmem:[%s163 + $0x50] sm:$0xff]
        %v209 = vld [vmem:[%s163 + $0x58] sm:$0xff]
        %v210 = vld [vmem:[%s163 + $0x60] sm:$0xff]
        %v211 = vld [vmem:[%s163 + $0x68] sm:$0xff]
        %v212 = vld [vmem:[%s163 + $0x70] sm:$0xff]
        %v213 = vld [vmem:[%s163 + $0x78] sm:$0xff]
        %v214 = vld [vmem:[%s163 + $0x80] sm:$0xff]
        %v215 = vld [vmem:[%s163 + $0x88] sm:$0xff]
        %v216 = vld [vmem:[%s163 + $0x90] sm:$0xff]
        %v217 = vld [vmem:[%s163 + $0x98] sm:$0xff]
        %v218 = vld [vmem:[%s163 + $0xa0] sm:$0xff]
        %v219 = vld [vmem:[%s163 + $0xa8] sm:$0xff]
        %v220 = vld [vmem:[%s163 + $0xb0] sm:$0xff]
        %v221 = vld [vmem:[%s163 + $0xb8] sm:$0xff]
        %v222 = vld [vmem:[%s163 + $0xc0] sm:$0xff]
        %v223 = vld [vmem:[%s163 + $0xc8] sm:$0xff]
        %v224 = vld [vmem:[%s163 + $0xd0] sm:$0xff]
        %v225 = vld [vmem:[%s163 + $0xd8] sm:$0xff]
        %v226 = vld [vmem:[%s163 + $0xe0] sm:$0xff]
        %v227 = vld [vmem:[%s163 + $0xe8] sm:$0xff]
        %v228 = vld [vmem:[%s163 + $0xf0] sm:$0xff]
        %v229 = vld [vmem:[%s163 + $0xf8] sm:$0xff]
        %v230 = vld [vmem:[%s163 + $0x100] sm:$0xff]
        %v231 = vld [vmem:[%s163 + $0x108] sm:$0xff]
        %v232 = vld [vmem:[%s163 + $0x110] sm:$0xff]
        %v233 = vld [vmem:[%s163 + $0x118] sm:$0xff]
        %v234 = vld [vmem:[%s163 + $0x120] sm:$0xff]
        %v235 = vld [vmem:[%s163 + $0x128] sm:$0xff]
        %v236 = vld [vmem:[%s163 + $0x130] sm:$0xff]
        %v237 = vld [vmem:[%s163 + $0x138] sm:$0xff]
        %v238 = vld [vmem:[%s163 + $0x140] sm:$0xff]
        %v239 = vld [vmem:[%s163 + $0x148] sm:$0xff]
        %v240 = vld [vmem:[%s163 + $0x150] sm:$0xff]
        %v241 = vld [vmem:[%s163 + $0x158] sm:$0xff]
        %v242 = vld [vmem:[%s163 + $0x160] sm:$0xff]
        %v243 = vld [vmem:[%s163 + $0x168] sm:$0xff]
        %v244 = vld [vmem:[%s163 + $0x170] sm:$0xff]
        %v245 = vld [vmem:[%s163 + $0x178] sm:$0xff]
        %v246 = vld [vmem:[%s163 + $0x180] sm:$0xff]
        %v247 = vld [vmem:[%s163 + $0x188] sm:$0xff]
        %v248 = vld [vmem:[%s163 + $0x190] sm:$0xff]
        %v249 = vld [vmem:[%s163 + $0x198] sm:$0xff]
        %v250 = vld [vmem:[%s163 + $0x1a0] sm:$0xff]
        %v251 = vld [vmem:[%s163 + $0x1a8] sm:$0xff]
        %v252 = vld [vmem:[%s163 + $0x1b0] sm:$0xff]
        %v253 = vld [vmem:[%s163 + $0x1b8] sm:$0xff]
        %v254 = vld [vmem:[%s163 + $0x1c0] sm:$0xff]
        %v255 = vld [vmem:[%s163 + $0x1c8] sm:$0xff]
        %v256 = vld [vmem:[%s163 + $0x1d0] sm:$0xff]
        %v257 = vld [vmem:[%s163 + $0x1d8] sm:$0xff]
        %v258 = vld [vmem:[%s163 + $0x1e0] sm:$0xff]
        %v259 = vld [vmem:[%s163 + $0x1e8] sm:$0xff]
        %v260 = vld [vmem:[%s163 + $0x1f0] sm:$0xff]
        %v261 = vld [vmem:[%s163 + $0x1f8] sm:$0xff]
        %v262 = vld [vmem:[%s172] sm:$0xff]
        %v263 = vld [vmem:[%s172 + $0x8] sm:$0xff]
        %v264 = vld [vmem:[%s172 + $0x10] sm:$0xff]
        %v265 = vld [vmem:[%s172 + $0x18] sm:$0xff]
        %v266 = vld [vmem:[%s172 + $0x20] sm:$0xff]
        %v267 = vld [vmem:[%s172 + $0x28] sm:$0xff]
        %v268 = vld [vmem:[%s172 + $0x30] sm:$0xff]
        %v269 = vld [vmem:[%s172 + $0x38] sm:$0xff]
        %v270 = vld [vmem:[%s172 + $0x40] sm:$0xff]
        %v271 = vld [vmem:[%s172 + $0x48] sm:$0xff]
        %v272 = vld [vmem:[%s172 + $0x50] sm:$0xff]
        %v273 = vld [vmem:[%s172 + $0x58] sm:$0xff]
        %v274 = vld [vmem:[%s172 + $0x60] sm:$0xff]
        %v275 = vld [vmem:[%s172 + $0x68] sm:$0xff]
        %v276 = vld [vmem:[%s172 + $0x70] sm:$0xff]
        %v277 = vld [vmem:[%s172 + $0x78] sm:$0xff]
        %v278 = vld [vmem:[%s172 + $0x80] sm:$0xff]
        %v279 = vld [vmem:[%s172 + $0x88] sm:$0xff]
        %v280 = vld [vmem:[%s172 + $0x90] sm:$0xff]
        %v281 = vld [vmem:[%s172 + $0x98] sm:$0xff]
        %v282 = vld [vmem:[%s172 + $0xa0] sm:$0xff]
        %v283 = vld [vmem:[%s172 + $0xa8] sm:$0xff]
        %v284 = vld [vmem:[%s172 + $0xb0] sm:$0xff]
        %v285 = vld [vmem:[%s172 + $0xb8] sm:$0xff]
        %v286 = vld [vmem:[%s172 + $0xc0] sm:$0xff]
        %v287 = vld [vmem:[%s172 + $0xc8] sm:$0xff]
        %v288 = vld [vmem:[%s172 + $0xd0] sm:$0xff]
        %v289 = vld [vmem:[%s172 + $0xd8] sm:$0xff]
        %v290 = vld [vmem:[%s172 + $0xe0] sm:$0xff]
        %v291 = vld [vmem:[%s172 + $0xe8] sm:$0xff]
        %v292 = vld [vmem:[%s172 + $0xf0] sm:$0xff]
        %v293 = vld [vmem:[%s172 + $0xf8] sm:$0xff]
        %v294 = vld [vmem:[%s172 + $0x100] sm:$0xff]
        %v295 = vld [vmem:[%s172 + $0x108] sm:$0xff]
        %v296 = vld [vmem:[%s172 + $0x110] sm:$0xff]
        %v297 = vld [vmem:[%s172 + $0x118] sm:$0xff]
        %v298 = vld [vmem:[%s172 + $0x120] sm:$0xff]
        %v299 = vld [vmem:[%s172 + $0x128] sm:$0xff]
        %v300 = vld [vmem:[%s172 + $0x130] sm:$0xff]
        %v301 = vld [vmem:[%s172 + $0x138] sm:$0xff]
        %v302 = vld [vmem:[%s172 + $0x140] sm:$0xff]
        %v303 = vld [vmem:[%s172 + $0x148] sm:$0xff]
        %v304 = vld [vmem:[%s172 + $0x150] sm:$0xff]
        %v305 = vld [vmem:[%s172 + $0x158] sm:$0xff]
        %v306 = vld [vmem:[%s172 + $0x160] sm:$0xff]
        %v307 = vld [vmem:[%s172 + $0x168] sm:$0xff]
        %v308 = vld [vmem:[%s172 + $0x170] sm:$0xff]
        %v309 = vld [vmem:[%s172 + $0x178] sm:$0xff]
        %v310 = vld [vmem:[%s172 + $0x180] sm:$0xff]
        %v311 = vld [vmem:[%s172 + $0x188] sm:$0xff]
        %v312 = vld [vmem:[%s172 + $0x190] sm:$0xff]
        %v313 = vld [vmem:[%s172 + $0x198] sm:$0xff]
        %v314 = vld [vmem:[%s172 + $0x1a0] sm:$0xff]
        %v315 = vld [vmem:[%s172 + $0x1a8] sm:$0xff]
        %v316 = vld [vmem:[%s172 + $0x1b0] sm:$0xff]
        %v317 = vld [vmem:[%s172 + $0x1b8] sm:$0xff]
        %v318 = vld [vmem:[%s172 + $0x1c0] sm:$0xff]
        %v319 = vld [vmem:[%s172 + $0x1c8] sm:$0xff]
        %v320 = vld [vmem:[%s172 + $0x1d0] sm:$0xff]
        %v321 = vld [vmem:[%s172 + $0x1d8] sm:$0xff]
        %v322 = vld [vmem:[%s172 + $0x1e0] sm:$0xff]
        %v323 = vld [vmem:[%s172 + $0x1e8] sm:$0xff]
        %v324 = vld [vmem:[%s172 + $0x1f0] sm:$0xff]
        %v325 = vld [vmem:[%s172 + $0x1f8] sm:$0xff]
        %v326 = vsub.f32 %v198, %v262
        %v327 = vsub.f32 %v199, %v263
        %v328 = vsub.f32 %v200, %v264
        %v329 = vsub.f32 %v201, %v265
        %v330 = vsub.f32 %v202, %v266
        %v331 = vsub.f32 %v203, %v267
        %v332 = vsub.f32 %v204, %v268
        %v333 = vsub.f32 %v205, %v269
        %v334 = vsub.f32 %v206, %v270
        %v335 = vsub.f32 %v207, %v271
        %v336 = vsub.f32 %v208, %v272
        %v337 = vsub.f32 %v209, %v273
        %v338 = vsub.f32 %v210, %v274
        %v339 = vsub.f32 %v211, %v275
        %v340 = vsub.f32 %v212, %v276
        %v341 = vsub.f32 %v213, %v277
        %v342 = vsub.f32 %v214, %v278
        %v343 = vsub.f32 %v215, %v279
        %v344 = vsub.f32 %v216, %v280
        %v345 = vsub.f32 %v217, %v281
        %v346 = vsub.f32 %v218, %v282
        %v347 = vsub.f32 %v219, %v283
        %v348 = vsub.f32 %v220, %v284
        %v349 = vsub.f32 %v221, %v285
        %v350 = vsub.f32 %v222, %v286
        %v351 = vsub.f32 %v223, %v287
        %v352 = vsub.f32 %v224, %v288
        %v353 = vsub.f32 %v225, %v289
        %v354 = vsub.f32 %v226, %v290
        %v355 = vsub.f32 %v227, %v291
        %v356 = vsub.f32 %v228, %v292
        %v357 = vsub.f32 %v229, %v293
        %v358 = vsub.f32 %v230, %v294
        %v359 = vsub.f32 %v231, %v295
        %v360 = vsub.f32 %v232, %v296
        %v361 = vsub.f32 %v233, %v297
        %v362 = vsub.f32 %v234, %v298
        %v363 = vsub.f32 %v235, %v299
        %v364 = vsub.f32 %v236, %v300
        %v365 = vsub.f32 %v237, %v301
        %v366 = vsub.f32 %v238, %v302
        %v367 = vsub.f32 %v239, %v303
        %v368 = vsub.f32 %v240, %v304
        %v369 = vsub.f32 %v241, %v305
        %v370 = vsub.f32 %v242, %v306
        %v371 = vsub.f32 %v243, %v307
        %v372 = vsub.f32 %v244, %v308
        %v373 = vsub.f32 %v245, %v309
        %v374 = vsub.f32 %v246, %v310
        %v375 = vsub.f32 %v247, %v311
        %v376 = vsub.f32 %v248, %v312
        %v377 = vsub.f32 %v249, %v313
        %v378 = vsub.f32 %v250, %v314
        %v379 = vsub.f32 %v251, %v315
        %v380 = vsub.f32 %v252, %v316
        %v381 = vsub.f32 %v253, %v317
        %v382 = vsub.f32 %v254, %v318
        %v383 = vsub.f32 %v255, %v319
        %v384 = vsub.f32 %v256, %v320
        %v385 = vsub.f32 %v257, %v321
        %v386 = vsub.f32 %v258, %v322
        %v387 = vsub.f32 %v259, %v323
        %v388 = vsub.f32 %v260, %v324
        %v389 = vsub.f32 %v261, %v325
        %v390 = vmul.f32 %v326, %v326
        %v391 = vmul.f32 %v327, %v327
        %v392 = vmul.f32 %v328, %v328
        %v393 = vmul.f32 %v329, %v329
        %v394 = vmul.f32 %v330, %v330
        %v395 = vmul.f32 %v331, %v331
        %v396 = vmul.f32 %v332, %v332
        %v397 = vmul.f32 %v333, %v333
        %v398 = vmul.f32 %v334, %v334
        %v399 = vmul.f32 %v335, %v335
        %v400 = vmul.f32 %v336, %v336
        %v401 = vmul.f32 %v337, %v337
        %v402 = vmul.f32 %v338, %v338
        %v403 = vmul.f32 %v339, %v339
        %v404 = vmul.f32 %v340, %v340
        %v405 = vmul.f32 %v341, %v341
        %v406 = vmul.f32 %v342, %v342
        %v407 = vmul.f32 %v343, %v343
        %v408 = vmul.f32 %v344, %v344
        %v409 = vmul.f32 %v345, %v345
        %v410 = vmul.f32 %v346, %v346
        %v411 = vmul.f32 %v347, %v347
        %v412 = vmul.f32 %v348, %v348
        %v413 = vmul.f32 %v349, %v349
        %v414 = vmul.f32 %v350, %v350
        %v415 = vmul.f32 %v351, %v351
        %v416 = vmul.f32 %v352, %v352
        %v417 = vmul.f32 %v353, %v353
        %v418 = vmul.f32 %v354, %v354
        %v419 = vmul.f32 %v355, %v355
        %v420 = vmul.f32 %v356, %v356
        %v421 = vmul.f32 %v357, %v357
        %v422 = vmul.f32 %v358, %v358
        %v423 = vmul.f32 %v359, %v359
        %v424 = vmul.f32 %v360, %v360
        %v425 = vmul.f32 %v361, %v361
        %v426 = vmul.f32 %v362, %v362
        %v427 = vmul.f32 %v363, %v363
        %v428 = vmul.f32 %v364, %v364
        %v429 = vmul.f32 %v365, %v365
        %v430 = vmul.f32 %v366, %v366
        %v431 = vmul.f32 %v367, %v367
        %v432 = vmul.f32 %v368, %v368
        %v433 = vmul.f32 %v369, %v369
        %v434 = vmul.f32 %v370, %v370
        %v435 = vmul.f32 %v371, %v371
        %v436 = vmul.f32 %v372, %v372
        %v437 = vmul.f32 %v373, %v373
        %v438 = vmul.f32 %v374, %v374
        %v439 = vmul.f32 %v375, %v375
        %v440 = vmul.f32 %v376, %v376
        %v441 = vmul.f32 %v377, %v377
        %v442 = vmul.f32 %v378, %v378
        %v443 = vmul.f32 %v379, %v379
        %v444 = vmul.f32 %v380, %v380
        %v445 = vmul.f32 %v381, %v381
        %v446 = vmul.f32 %v382, %v382
        %v447 = vmul.f32 %v383, %v383
        %v448 = vmul.f32 %v384, %v384
        %v449 = vmul.f32 %v385, %v385
        %v450 = vmul.f32 %v386, %v386
        %v451 = vmul.f32 %v387, %v387
        %v452 = vmul.f32 %v388, %v388
        %v453 = vmul.f32 %v389, %v389
        %454 = vst [vmem:[%s197] sm:$0xff] %v390
        %455 = vst [vmem:[%s197 + $0x8] sm:$0xff] %v391
        %456 = vst [vmem:[%s197 + $0x10] sm:$0xff] %v392
        %457 = vst [vmem:[%s197 + $0x18] sm:$0xff] %v393
        %458 = vst [vmem:[%s197 + $0x20] sm:$0xff] %v394
        %459 = vst [vmem:[%s197 + $0x28] sm:$0xff] %v395
        %460 = vst [vmem:[%s197 + $0x30] sm:$0xff] %v396
        %461 = vst [vmem:[%s197 + $0x38] sm:$0xff] %v397
        %462 = vst [vmem:[%s197 + $0x40] sm:$0xff] %v398
        %463 = vst [vmem:[%s197 + $0x48] sm:$0xff] %v399
        %464 = vst [vmem:[%s197 + $0x50] sm:$0xff] %v400
        %465 = vst [vmem:[%s197 + $0x58] sm:$0xff] %v401
        %466 = vst [vmem:[%s197 + $0x60] sm:$0xff] %v402
        %467 = vst [vmem:[%s197 + $0x68] sm:$0xff] %v403
        %468 = vst [vmem:[%s197 + $0x70] sm:$0xff] %v404
        %469 = vst [vmem:[%s197 + $0x78] sm:$0xff] %v405
        %470 = vst [vmem:[%s197 + $0x80] sm:$0xff] %v406
        %471 = vst [vmem:[%s197 + $0x88] sm:$0xff] %v407
        %472 = vst [vmem:[%s197 + $0x90] sm:$0xff] %v408
        %473 = vst [vmem:[%s197 + $0x98] sm:$0xff] %v409
        %474 = vst [vmem:[%s197 + $0xa0] sm:$0xff] %v410
        %475 = vst [vmem:[%s197 + $0xa8] sm:$0xff] %v411
        %476 = vst [vmem:[%s197 + $0xb0] sm:$0xff] %v412
        %477 = vst [vmem:[%s197 + $0xb8] sm:$0xff] %v413
        %478 = vst [vmem:[%s197 + $0xc0] sm:$0xff] %v414
        %479 = vst [vmem:[%s197 + $0xc8] sm:$0xff] %v415
        %480 = vst [vmem:[%s197 + $0xd0] sm:$0xff] %v416
        %481 = vst [vmem:[%s197 + $0xd8] sm:$0xff] %v417
        %482 = vst [vmem:[%s197 + $0xe0] sm:$0xff] %v418
        %483 = vst [vmem:[%s197 + $0xe8] sm:$0xff] %v419
        %484 = vst [vmem:[%s197 + $0xf0] sm:$0xff] %v420
        %485 = vst [vmem:[%s197 + $0xf8] sm:$0xff] %v421
        %486 = vst [vmem:[%s197 + $0x100] sm:$0xff] %v422
        %487 = vst [vmem:[%s197 + $0x108] sm:$0xff] %v423
        %488 = vst [vmem:[%s197 + $0x110] sm:$0xff] %v424
        %489 = vst [vmem:[%s197 + $0x118] sm:$0xff] %v425
        %490 = vst [vmem:[%s197 + $0x120] sm:$0xff] %v426
        %491 = vst [vmem:[%s197 + $0x128] sm:$0xff] %v427
        %492 = vst [vmem:[%s197 + $0x130] sm:$0xff] %v428
        %493 = vst [vmem:[%s197 + $0x138] sm:$0xff] %v429
        %494 = vst [vmem:[%s197 + $0x140] sm:$0xff] %v430
        %495 = vst [vmem:[%s197 + $0x148] sm:$0xff] %v431
        %496 = vst [vmem:[%s197 + $0x150] sm:$0xff] %v432
        %497 = vst [vmem:[%s197 + $0x158] sm:$0xff] %v433
        %498 = vst [vmem:[%s197 + $0x160] sm:$0xff] %v434
        %499 = vst [vmem:[%s197 + $0x168] sm:$0xff] %v435
        %500 = vst [vmem:[%s197 + $0x170] sm:$0xff] %v436
        %501 = vst [vmem:[%s197 + $0x178] sm:$0xff] %v437
        %502 = vst [vmem:[%s197 + $0x180] sm:$0xff] %v438
        %503 = vst [vmem:[%s197 + $0x188] sm:$0xff] %v439
        %504 = vst [vmem:[%s197 + $0x190] sm:$0xff] %v440
        %505 = vst [vmem:[%s197 + $0x198] sm:$0xff] %v441
        %506 = vst [vmem:[%s197 + $0x1a0] sm:$0xff] %v442
        %507 = vst [vmem:[%s197 + $0x1a8] sm:$0xff] %v443
        %508 = vst [vmem:[%s197 + $0x1b0] sm:$0xff] %v444
        %509 = vst [vmem:[%s197 + $0x1b8] sm:$0xff] %v445
        %510 = vst [vmem:[%s197 + $0x1c0] sm:$0xff] %v446
        %511 = vst [vmem:[%s197 + $0x1c8] sm:$0xff] %v447
        %512 = vst [vmem:[%s197 + $0x1d0] sm:$0xff] %v448
        %513 = vst [vmem:[%s197 + $0x1d8] sm:$0xff] %v449
        %514 = vst [vmem:[%s197 + $0x1e0] sm:$0xff] %v450
        %515 = vst [vmem:[%s197 + $0x1e8] sm:$0xff] %v451
        %516 = vst [vmem:[%s197 + $0x1f0] sm:$0xff] %v452
        %517 = vst [vmem:[%s197 + $0x1f8] sm:$0xff] %v453
        %s518 = sand.u32 %s82, 1
        %s519 = scalar_lea.sflag [#allocation4], %s518
        %s520 = sand.u32 %s82, 1
        %s521 = smul.addr %s520, 512
        %s522 = scalar_lea.vmem [#allocation7], %s521
        // Predicated region
        $region37: #{tpu_custom_call.1} parent=27 // pred_check
          %p523 = pneg %p92
        $region38: #{tpu_custom_call.1} parent=27 // pred_check_branch
          %525 = sbr.rel (%p523) target = $region40
        $region39: #{tpu_custom_call.1} parent=27 // pred_region
          %s527 = ssub.s32 8192, 8192
          %528 = vsyncadd %s519, %s527
          %s529 = smul.addr %s22, 64
          %s530 = smul.addr %s529, 128
          %s531 = scalar_lea.hbm %s2, %s530
          %s533 = sshll.u32 %s522, 4
          %s534 = int_to_ptr.vmem [resolvable:$true] %s533
          %536 = dma.vmem_to_hbm [thread:$0]  %s534, 8192, %s531, %s519
        $region40: #{tpu_custom_call.1} parent=27 // pred_fallthru
          _
      $region28: #{tpu_custom_call.1} parent=5 // pred_fallthru
        _
      %p537 = scmp.le.s32.totalorder 2, %s17
      // Predicated region
      $region41: #{tpu_custom_call.1} parent=5 // pred_check
        %p538 = pneg %p537
      $region42: #{tpu_custom_call.1} parent=5 // pred_check_branch
        %540 = sbr.rel (%p538) target = $region44
      $region43: #{tpu_custom_call.1} parent=5 // pred_region
        %s541 = ssub.s32 %s17, 2
        // Predicated region
        $region45: #{tpu_custom_call.1} parent=43 // pred_check
          %p542 = pneg %p98
        $region46: #{tpu_custom_call.1} parent=43 // pred_check_branch
          %544 = sbr.rel (%p542) target = $region48
        $region47: #{tpu_custom_call.1} parent=43 // pred_region
          %s545 = sand.u32 %s83, 1
          %s546 = scalar_lea.sflag [#allocation4], %s545
          %s547 = sand.u32 %s83, 1
          %s548 = smul.addr %s547, 512
          %s549 = scalar_lea.vmem [#allocation7], %s548
          %550 = dma.done %s546, 8192
        $region48: #{tpu_custom_call.1} parent=43 // pred_fallthru
          _
      $region44: #{tpu_custom_call.1} parent=5 // pred_fallthru
        _
    $region6: #{tpu_custom_call.1} parent=1 // loop_footer
      %s21 = sadd.s32 1, %s17
    $region7: #{tpu_custom_call.1} parent=1 // loop_footer_branch
      %16 = sbr.rel target = $region3
    $region8: #{tpu_custom_call.1} parent=1 // loop_exit
      _
    %551 = vsyncpa [#allocation3], 1
    %s552 = scalar_lea.sflag [#allocation3], 1
    %553 = vsyncpa %s552, 1
    %554 = vsyncpa [#allocation6], 1
    %s555 = scalar_lea.sflag [#allocation6], 1
    %556 = vsyncpa %s555, 1
    %557 = vsyncpa [#allocation4], 1
    %s558 = scalar_lea.sflag [#allocation4], 1
    %559 = vsyncpa %s558, 1

</llo_original>
